<compile_context>
chip_gen: v6e
topology: v6e:2x2x1
jax: 0.10.0
libtpu: 0.0.40
codegen_flags: <defaults>
</compile_context>

<pallas_src>
import functools

import numpy as np
import jax
import jax.numpy as jnp
from jax.experimental import pallas as pl
from jax.experimental.pallas import tpu as pltpu


def _rff_kernel(x_ref, w_ref, b_ref, o_ref, *, scale):
    # x_ref: (tm, K)   w_ref: (K, tn)   b_ref: (1, tn)   o_ref: (tm, tn)
    h = jnp.dot(x_ref[...], w_ref[...], preferred_element_type=jnp.float32)
    h = h + b_ref[...]                      # broadcast (1, tn) over rows
    o_ref[...] = (jnp.cos(h) * scale).astype(o_ref.dtype)


def _round_up(a, b):
    return (a + b - 1) // b * b


def rff_embedding(x, weight, bias, *, tm=1024, tn=512, trim_output=True):
    """x: (M, K) f32, weight: (K, N) f32, bias: (N,) f32 -> (M, N) f32.

    If trim_output=False the (M, round_up(N,128)) lane-padded result is
    returned (zero columns beyond N already multiplied by cos(garbage)*scale
    of padded-zero weights/bias => cos(0)*scale constant; callers that only
    read the first N columns can skip the trailing HBM copy of the slice).
    """
    M, K = x.shape
    K2, N = weight.shape
    assert K == K2 and bias.shape == (N,)

    # Scale uses the *logical* num_outputs, independent of lane padding.
    scale = float(np.sqrt(2.0 / N))

    # Lane-pad the output dimension to a multiple of 128 (one-time, cold path,
    # outside the hot kernel): unmasked vst + aligned writeback rows.
    n_pad = _round_up(N, 128)
    if n_pad != N:
        weight = jnp.pad(weight, ((0, 0), (0, n_pad - N)))
        bias = jnp.pad(bias, (0, n_pad - N))
    bias2d = bias.reshape(1, n_pad)

    # Row tile: multiple of 8 sublanes, capped at tm, and chosen so large
    # batches split into ~8 grid steps (keeps both v7x TensorCores busy).
    tm_eff = min(tm, _round_up(pl.cdiv(M, 8), 8))
    # Output-column tile: full N when it fits, otherwise 512-lane slabs.
    tn_eff = min(tn, n_pad)

    grid = (pl.cdiv(M, tm_eff), pl.cdiv(n_pad, tn_eff))
    kernel = functools.partial(_rff_kernel, scale=scale)

    out = pl.pallas_call(
        kernel,
        out_shape=jax.ShapeDtypeStruct((M, n_pad), jnp.float32),
        grid_spec=pltpu.PrefetchScalarGridSpec(
            num_scalar_prefetch=0,
            grid=grid,
            in_specs=[
                pl.BlockSpec((tm_eff, K), lambda i, j: (i, 0)),      # x rows
                pl.BlockSpec((K, tn_eff), lambda i, j: (0, j)),      # W cols
                pl.BlockSpec((1, tn_eff), lambda i, j: (0, j)),      # bias
            ],
            out_specs=pl.BlockSpec((tm_eff, tn_eff), lambda i, j: (i, j)),
        ),
        compiler_params=pltpu.CompilerParams(
            dimension_semantics=("parallel", "parallel"),
            # Explicit budget: covers double-buffered (tm,K)+(tm,tn) f32 tiles
            # plus resident W/bias slab on every generation (v5e default
            # scoped VMEM is only 16 MiB; v7x physical is 64 MiB).
            vmem_limit_bytes=32 * 1024 * 1024,
        ),
    )(x, weight, bias2d)

    if trim_output and n_pad != N:
        out = out[:, :N]
    return out


if __name__ == "__main__":
    num_features = 32
    num_outputs = 100   # module default; lane-padded to 128 inside the wrapper
    sigma = 1.0
    batch = 8

    key = jax.random.PRNGKey(0)
    kx, kw, kb = jax.random.split(key, 3)

    # Deterministic parameter init mirroring the PyTorch module:
    #   weight ~ N(0, 1) * sqrt(2) / sigma ;  bias ~ U(-pi, pi)
    weight = jax.random.normal(kw, (num_features, num_outputs), jnp.float32) \
        * (np.sqrt(2.0) / sigma)
    bias = jax.random.uniform(kb, (num_outputs,), jnp.float32,
                              minval=-np.pi, maxval=np.pi)
    x = jax.random.normal(kx, (batch, num_features), jnp.float32)

    out = rff_embedding(x, weight, bias)
    out = jax.block_until_ready(out)

    # Reference check in plain JAX.
    ref = jnp.cos(x @ weight + bias) * np.sqrt(2.0 / num_outputs)
    np.testing.assert_allclose(np.asarray(out), np.asarray(ref),
                               rtol=1e-4, atol=1e-4)
    print("KERNEL_OK")
</pallas_src>

<mosaic_0001>
module attributes {stable_mosaic.version = 11 : i64} {
  func.func @_rff_kernel(%arg0: i32, %arg1: i32, %arg2: memref<8x32xf32, #tpu.memory_space<vmem>>, %arg3: memref<32x128xf32, #tpu.memory_space<vmem>>, %arg4: memref<1x128xf32, #tpu.memory_space<vmem>>, %arg5: memref<8x128xf32, #tpu.memory_space<vmem>>) attributes {dimension_semantics = [#tpu.dimension_semantics<parallel>, #tpu.dimension_semantics<parallel>], iteration_bounds = array<i64: 1, 1>, scalar_prefetch = 0 : i64, scratch_operands = 0 : i64, tpu.core_type = #tpu.core_type<tc>, window_params = [{transform_indices = @transform_0, window_bounds = array<i64: 8, 32>}, {transform_indices = @transform_1, window_bounds = array<i64: 32, 128>}, {transform_indices = @transform_2, window_bounds = array<i64: 1, 128>}, {transform_indices = @transform_3, window_bounds = array<i64: 8, 128>}]} {
    %c0 = arith.constant 0 : index
    %c0_0 = arith.constant 0 : index
    %0 = vector.load %arg2[%c0, %c0_0] : memref<8x32xf32, #tpu.memory_space<vmem>>, vector<8x32xf32>
    %c0_1 = arith.constant 0 : index
    %c0_2 = arith.constant 0 : index
    %1 = vector.load %arg3[%c0_1, %c0_2] : memref<32x128xf32, #tpu.memory_space<vmem>>, vector<32x128xf32>
    %cst = arith.constant dense<0.000000e+00> : vector<8x128xf32>
    %2 = tpu.matmul %0, %1, %cst {dimension_numbers = #tpu.dot_dimension_numbers<[1], [0], [0], [1], [0, 0, 1, 1], [], []>} : vector<8x32xf32>, vector<32x128xf32>, vector<8x128xf32> -> vector<8x128xf32>
    %c0_3 = arith.constant 0 : index
    %c0_4 = arith.constant 0 : index
    %3 = vector.load %arg4[%c0_3, %c0_4] : memref<1x128xf32, #tpu.memory_space<vmem>>, vector<1x128xf32>
    %4 = vector.broadcast %3 : vector<1x128xf32> to vector<8x128xf32>
    %5 = arith.addf %2, %4 : vector<8x128xf32>
    %6 = math.cos %5 : vector<8x128xf32>
    %cst_5 = arith.constant 0.141421363 : f32
    %7 = vector.broadcast %cst_5 : f32 to vector<8x128xf32>
    %8 = arith.mulf %6, %7 : vector<8x128xf32>
    %c0_6 = arith.constant 0 : index
    %c0_7 = arith.constant 0 : index
    %9 = vector.load %arg5[%c0_6, %c0_7] : memref<8x128xf32, #tpu.memory_space<vmem>>, vector<8x128xf32>
    tpu.vector_store %arg5[%c0_6, %c0_7], %8 {strides = array<i32>} : memref<8x128xf32, #tpu.memory_space<vmem>>, vector<8x128xf32>,
    return
  }
  func.func @transform_0(%arg0: i32, %arg1: i32) -> (i32, i32) {
    %c0_i32 = arith.constant 0 : i32
    %c0_i32_0 = arith.constant 0 : i32
    return %arg0, %c0_i32 : i32, i32
  }
  func.func @transform_1(%arg0: i32, %arg1: i32) -> (i32, i32) {
    %c0_i32 = arith.constant 0 : i32
    %c0_i32_0 = arith.constant 0 : i32
    return %c0_i32, %arg1 : i32, i32
  }
  func.func @transform_2(%arg0: i32, %arg1: i32) -> (i32, i32) {
    %c0_i32 = arith.constant 0 : i32
    %c0_i32_0 = arith.constant 0 : i32
    return %c0_i32, %arg1 : i32, i32
  }
  func.func @transform_3(%arg0: i32, %arg1: i32) -> (i32, i32) {
    %c0_i32 = arith.constant 0 : i32
    return %arg0, %arg1 : i32, i32
  }
}

</mosaic_0001>

<llo_original>
// kernel: tpu_custom_call.1
$region0: #{tpu_custom_call.1}
  #allocation0 [shape = 'u32[]', space=smem, size = 0x4, offset = 0x4, fixed_abs, tag = 'smem constant byte address 0x4 - core index']
  #allocation1 [shape = 'u32[144,128]{1,0:T(1,128)}', space=vmem, size = 0x12000, scoped, tag = 'internal scratch']
  %s0 = inlined_call_operand.hbm [shape: f32[8,32], index: 0, kind: input, shape index: {}]
  %s1 = inlined_call_operand.hbm [shape: f32[32,128], index: 1, kind: input, shape index: {}]
  %s2 = inlined_call_operand.vmem [shape: f32[1,128], index: 2, kind: input, shape index: {}]
  %s3 = inlined_call_operand.hbm [shape: f32[8,128], index: 3, kind: output, shape index: {}]
  %s4 = sld [smem:[#allocation0]]
  $region30: #{tpu_custom_call.1} parent=0
    _
  %s6 = ssub.s32 1, %s4
  %s7 = scalar_select 0, %s6, %s4
  $region1: #{tpu_custom_call.1} parent=0
    #allocation2 [shape = 'u8[4096]{0}', space=vmem, size = 0x1000, scoped, tag = 'input window, operand 0, single buffered']
    #allocation3 [shape = 's32[1]{0}', space=sflag, size = 0x4, scoped, tag = 'scoped memory for tpu_custom_call.1']
    #allocation4 [shape = 's32[1]{0}', space=sflag, size = 0x4, scoped, tag = 'scoped memory for tpu_custom_call.1']
    #allocation5 [shape = 'u8[16384]{0}', space=vmem, size = 0x4000, scoped, tag = 'input window, operand 1, single buffered']
    #allocation6 [shape = 's32[1]{0}', space=sflag, size = 0x4, scoped, tag = 'scoped memory for tpu_custom_call.1']
    #allocation7 [shape = 'u8[4096]{0}', space=vmem, size = 0x1000, scoped, tag = 'output window, operand 0, single buffered']
    %8 = vsyncpa [#allocation3], 0
    %9 = vsyncpa [#allocation6], 0
    %10 = vsyncpa [#allocation4], 0
    // Predicated region
    $region2: #{tpu_custom_call.1} parent=1 // pred_check
      _
    $region3: #{tpu_custom_call.1} parent=1 // pred_check_branch
      %12 = sbr.rel (0) target = $region5
    $region4: #{tpu_custom_call.1} parent=1 // pred_region
      %s14 = ssub.s32 128, 128
      %15 = vsyncadd [#allocation3], %s14
      %s17 = sshll.u32 [#allocation2], 4
      %s18 = int_to_ptr.vmem [resolvable:$true] %s17
      %20 = dma.hbm_to_vmem [thread:$0]  %s0, 128, %s18, [#allocation3]
    $region5: #{tpu_custom_call.1} parent=1 // pred_fallthru
      _
    // Predicated region
    $region6: #{tpu_custom_call.1} parent=1 // pred_check
      _
    $region7: #{tpu_custom_call.1} parent=1 // pred_check_branch
      %22 = sbr.rel (0) target = $region9
    $region8: #{tpu_custom_call.1} parent=1 // pred_region
      %s24 = ssub.s32 512, 512
      %25 = vsyncadd [#allocation6], %s24
      %s26 = sshll.u32 [#allocation5], 4
      %s27 = int_to_ptr.vmem [resolvable:$true] %s26
      %32 = dma.hbm_to_vmem [thread:$0]  %s1, 512, %s27, [#allocation6], 128, 128, 8
    $region9: #{tpu_custom_call.1} parent=1 // pred_fallthru
      _
    // Predicated region
    $region10: #{tpu_custom_call.1} parent=1 // pred_check
      _
    $region11: #{tpu_custom_call.1} parent=1 // pred_check_branch
      %34 = sbr.rel (0) target = $region13
    $region12: #{tpu_custom_call.1} parent=1 // pred_region
      _
    $region13: #{tpu_custom_call.1} parent=1 // pred_fallthru
      _
    // Predicated region
    $region14: #{tpu_custom_call.1} parent=1 // pred_check
      _
    $region15: #{tpu_custom_call.1} parent=1 // pred_check_branch
      %36 = sbr.rel (0) target = $region17
    $region16: #{tpu_custom_call.1} parent=1 // pred_region
      %37 = dma.done [#allocation3], 128
    $region17: #{tpu_custom_call.1} parent=1 // pred_fallthru
      _
    // Predicated region
    $region18: #{tpu_custom_call.1} parent=1 // pred_check
      _
    $region19: #{tpu_custom_call.1} parent=1 // pred_check_branch
      %39 = sbr.rel (0) target = $region21
    $region20: #{tpu_custom_call.1} parent=1 // pred_region
      %40 = dma.done [#allocation6], 512
    $region21: #{tpu_custom_call.1} parent=1 // pred_fallthru
      _
    %v41 = vld [vmem:[#allocation2] sm:$0xff]
    %v42 = vld [vmem:[#allocation5] sm:$0xff]
    %v43 = vld [vmem:[#allocation5 + $0x8] sm:$0xff]
    %v44 = vld [vmem:[#allocation5 + $0x10] sm:$0xff]
    %v45 = vld [vmem:[#allocation5 + $0x18] sm:$0xff]
    %v46 = vld [vmem:[%s2] sm:$0x1]
    %v48 = vlaneseq
    %v49 = vshrl.u32 %v48, 7
    %v50 = vsub.s32 0, %v49
    %v51 = vrot.slane %v46, %v50
    %vm53 = vcmask 261120
    %v55 = vsel %vm53, %v41, 0
    %57 = vmatprep.subr.mxu0 0.0
    %58 = vmatpush1.msra.mxu0 0.0
    %59 = vmatprep.subr.mxu0 0.0
    %60 = vmatpush1.msra.mxu0 0.0
    %61 = vmatprep.subr.mxu0 0.0
    %62 = vmatpush1.msra.mxu0 0.0
    %63 = vmatprep.subr.mxu0 0.0
    %64 = vmatpush1.msra.mxu0 0.0
    %65 = vmatprep.subr.mxu0 0.0
    %66 = vmatpush1.msra.mxu0 0.0
    %67 = vmatprep.subr.mxu0 0.0
    %68 = vmatpush1.msra.mxu0 0.0
    %69 = vmatprep.subr.mxu0 0.0
    %70 = vmatpush1.msra.mxu0 0.0
    %71 = vmatprep.subr.mxu0 0.0
    %72 = vmatpush1.msra.mxu0 0.0
    %73 = vmatprep.subr.mxu0 0.0
    %74 = vmatpush1.msra.mxu0 0.0
    %75 = vmatprep.subr.mxu0 0.0
    %76 = vmatpush1.msra.mxu0 0.0
    %77 = vmatprep.subr.mxu0 0.0
    %78 = vmatpush1.msra.mxu0 0.0
    %79 = vmatprep.subr.mxu0 0.0
    %80 = vmatpush1.msra.mxu0 0.0
    %81 = vmatprep.subr.mxu0 0.0
    %82 = vmatpush1.msra.mxu0 %v45
    %83 = vmatprep.subr.mxu0 0.0
    %84 = vmatpush1.msra.mxu0 %v44
    %85 = vmatprep.subr.mxu0 0.0
    %86 = vmatpush1.msra.mxu0 %v43
    %87 = vmatprep.subr.mxu0 0.0
    %88 = vmatpush1.msra.mxu0 %v42
    %89 = vmatprep.subr.mxu0 0.0
    %90 = vmatpush2.msra.mxu0 0.0
    %91 = vmatprep.subr.mxu0 0.0
    %92 = vmatpush2.msra.mxu0 0.0
    %93 = vmatprep.subr.mxu0 0.0
    %94 = vmatpush2.msra.mxu0 0.0
    %95 = vmatprep.subr.mxu0 0.0
    %96 = vmatpush2.msra.mxu0 0.0
    %97 = vmatprep.subr.mxu0 0.0
    %98 = vmatpush2.msra.mxu0 0.0
    %99 = vmatprep.subr.mxu0 0.0
    %100 = vmatpush2.msra.mxu0 0.0
    %101 = vmatprep.subr.mxu0 0.0
    %102 = vmatpush2.msra.mxu0 0.0
    %103 = vmatprep.subr.mxu0 0.0
    %104 = vmatpush2.msra.mxu0 0.0
    %105 = vmatprep.subr.mxu0 0.0
    %106 = vmatpush2.msra.mxu0 0.0
    %107 = vmatprep.subr.mxu0 0.0
    %108 = vmatpush2.msra.mxu0 0.0
    %109 = vmatprep.subr.mxu0 0.0
    %110 = vmatpush2.msra.mxu0 0.0
    %111 = vmatprep.subr.mxu0 0.0
    %112 = vmatpush2.msra.mxu0 0.0
    %113 = vmatprep.subr.mxu0 0.0
    %114 = vmatpush2.msra.mxu0 0.0
    %115 = vmatprep.subr.mxu0 0.0
    %116 = vmatpush2.msra.mxu0 0.0
    %117 = vmatprep.subr.mxu0 0.0
    %118 = vmatpush2.msra.mxu0 0.0
    %119 = vmatprep.subr.mxu0 0.0
    %120 = vmatpush2.msra.mxu0 0.0
    %121 = vmatprep.mubr.f32.mxu0 0.0
    %122 = vmatmul.mubr.f32.gmra.mxu0 %v55
    %v123 = vpop.f32.mrf.mxu0
    %v124 = vadd.f32 %v51, %v123
    %v125 = vpop.f32.mrf.mxu0
    %126 = vdwg.mxu0
    %v127 = vand.u32 2147483647, %v124
    %vm128 = vcmp.le.f32.partialorder %v127, 0.7853982
    %vm129 = vcmp.lt.s32.totalorder %v124, 0
    %v130 = vand.u32 %v124, 2139095040
    %v131 = vshrl.u32 %v130, 23
    %v132 = vsub.s32 %v131, 127
    %v133 = vand.u32 2147483647, %v124
    %v134 = vand.u32 %v133, 8388607
    %v135 = vor.u32 %v134, 8388608
    %v136 = vsub.s32 0, %v135
    %v137 = vadd.s32 %v132, 1
    %vm138 = vcmp.gt.s32.totalorder %v137, 0
    %v139 = vsel %vm138, %v137, 0
    %v140 = vshrl.u32 %v139, 5
    %v141 = vand.u32 %v139, 31
    %v142 = vsub.s32 32, %v141
    %v143 = vshrl.u32 683565275, %v142
    %v144 = vshll.u32 683565275, %v141
    %v145 = vshrl.u32 2475754826, %v142
    %v146 = vor.u32 %v144, %v145
    %v147 = vshll.u32 2475754826, %v141
    %v148 = vshrl.u32 2131351028, %v142
    %v149 = vor.u32 %v147, %v148
    %v150 = vshll.u32 2131351028, %v141
    %v151 = vshrl.u32 2102212464, %v142
    %v152 = vor.u32 %v150, %v151
    %v153 = vshll.u32 2102212464, %v141
    %v154 = vshrl.u32 920167782, %v142
    %v155 = vor.u32 %v153, %v154
    %v156 = vshll.u32 920167782, %v141
    %v157 = vshrl.u32 1326507024, %v142
    %v158 = vor.u32 %v156, %v157
    %vm159 = vcmp.lt.s32.totalorder %v140, 1
    %vm160 = vcmp.lt.s32.totalorder %v140, 2
    %vm161 = vcmp.lt.s32.totalorder %v140, 3
    %vm162 = vcmp.lt.s32.totalorder %v140, 4
    %v163 = vsel %vm159, %v143, %v146
    %v164 = vsel %vm162, %v152, 2102212464
    %v165 = vsel %vm161, %v149, %v164
    %v166 = vsel %vm160, %v163, %v165
    %v167 = vsel %vm159, %v146, %v149
    %v168 = vsel %vm162, %v155, 920167782
    %v169 = vsel %vm161, %v152, %v168
    %v170 = vsel %vm160, %v167, %v169
    %v171 = vsel %vm159, %v149, %v152
    %v172 = vsel %vm162, %v158, 1326507024
    %v173 = vsel %vm161, %v155, %v172
    %v174 = vsel %vm160, %v171, %v173
    %v175 = vshll.u32 %v135, 8
    %v176 = vmul.u32.u64.compose %v175, %v174
    %v177 = vextract.low.u32 %v176
    %v178 = vextract.high.u32 %v176
    %v179 = vmul.u32.u64.compose %v175, %v170
    %v180 = vextract.low.u32 %v179
    %v181 = vextract.high.u32 %v179
    %v182 = vmul.u32 %v175, %v166
    %v183 = vadd.s32 %v178, %v180
    %vm184 = vc.u32 %v178, %v180
    %v185 = vadd.s32 %v181, 1
    %v186 = vsel %vm184, %v185, %v181
    %v187 = vadd.s32 %v182, %v186
    %v188 = vadd.s32 %v187, 536870912
    %v189 = vshrl.u32 %v188, 30
    %v190 = vshll.u32 %v189, 30
    %v191 = vsub.s32 %v187, %v190
    %vm192 = vcmp.lt.s32.totalorder %v191, 0
    %v193 = vsub.s32 0, %v191
    %v194 = vsel %vm192, %v193, %v191
    %v195 = vclz %v194
    %v196 = vsub.s32 %v195, 2
    %vm197 = vcmp.gt.s32.totalorder 0, %v196
    %v198 = vsel %vm197, 0, %v196
    %v199 = vsub.s32 32, %v198
    %v200 = vshll.u32 %v191, %v198
    %v201 = vshrl.u32 %v183, %v199
    %v202 = vor.u32 %v200, %v201
    %v203 = vsub.s32 4294967266, %v198
    %v204 = vadd.s32 %v203, 127
    %v205 = vshll.u32 %v204, 23
    %v206 = vor.u32 4788187, %v205
    %v207 = vand.u32 2147483647, %v206
    %v209 = vcvt.s32.f32 %v202
    %v210 = vmul.f32 %v209, %v207
    %v211 = vxor.u32 %v210, 2147483648
    %v212 = vsel %vm129, %v211, %v210
    %v213 = vsub.s32 4, %v189
    %v214 = vsel %vm129, %v213, %v189
    %v215 = vsel %vm128, %v124, %v212
    %v216 = vsel %vm128, 0, %v214
    %v217 = vcosq.f32.pop %v215
    %v218 = vsinq.f32.pop %v215
    %vm219 = vweird.f32 %v124
    %v220 = vand.u32 %v216, 3
    %vm221 = vcmp.lt.s32.totalorder %v220, 2
    %vm222 = vcmp.eq.s32.totalorder %v220, 0
    %v223 = vxor.u32 %v218, 2147483648
    %v224 = vsel %vm222, %v217, %v223
    %vm225 = vcmp.eq.s32.totalorder %v220, 2
    %v226 = vxor.u32 %v217, 2147483648
    %v227 = vsel %vm225, %v226, %v218
    %v228 = vsel %vm221, %v224, %v227
    %v229 = vsel %vm219, nan, %v228
    %v230 = vmul.f32 %v229, 0.14142136
    %231 = vst [vmem:[#allocation7] sm:$0xff] %v230
    // Predicated region
    $region22: #{tpu_custom_call.1} parent=1 // pred_check
      _
    $region23: #{tpu_custom_call.1} parent=1 // pred_check_branch
      %233 = sbr.rel (0) target = $region25
    $region24: #{tpu_custom_call.1} parent=1 // pred_region
      %s235 = ssub.s32 128, 128
      %236 = vsyncadd [#allocation4], %s235
      %s238 = sshll.u32 [#allocation7], 4
      %s239 = int_to_ptr.vmem [resolvable:$true] %s238
      %241 = dma.vmem_to_hbm [thread:$0]  %s239, 128, %s3, [#allocation4]
    $region25: #{tpu_custom_call.1} parent=1 // pred_fallthru
      _
    // Predicated region
    $region26: #{tpu_custom_call.1} parent=1 // pred_check
      _
    $region27: #{tpu_custom_call.1} parent=1 // pred_check_branch
      %243 = sbr.rel (0) target = $region29
    $region28: #{tpu_custom_call.1} parent=1 // pred_region
      %244 = dma.done [#allocation4], 128
    $region29: #{tpu_custom_call.1} parent=1 // pred_fallthru
      _
    %245 = vsyncpa [#allocation3], 1
    %246 = vsyncpa [#allocation6], 1
    %247 = vsyncpa [#allocation4], 1

</llo_original>
